<compile_context>
chip_gen: v6e
topology: v6e:2x2x1
jax: 0.10.0
libtpu: 0.0.40
codegen_flags: <defaults>
</compile_context>

<pallas_src>
import functools

import jax
import jax.numpy as jnp
from jax import lax
from jax.experimental import pallas as pl
from jax.experimental.pallas import tpu as pltpu


def _round_up(x, m):
    return (x + m - 1) // m * m


def _vmem_capacity_bytes():
    """Physical VMEM per TensorCore (64 MiB on v7x, 128 MiB on v5e/v6e)."""
    try:
        return int(pltpu.get_tpu_info().vmem_capacity_bytes)
    except Exception:
        return 128 << 20


def _resident_spec(shape):
    """VMEM-resident operand: constant index map + single buffer.

    Constant-index blocks are double-buffered by default; requesting a single
    buffer halves the resident-weight footprint (critical on v7x).
    """
    index_map = lambda i: (0, 0)
    if hasattr(pl, "Buffered"):
        try:
            return pl.BlockSpec(shape, index_map, pipeline_mode=pl.Buffered(1))
        except TypeError:
            pass  # older jax without pipeline_mode kwarg
    return pl.BlockSpec(shape, index_map)


def _vmem_limit_bytes(tm, h, i, cap, out_bytes):
    weights = 2 * h * i * 2                          # W1 + W2 bf16, single-buffered
    params = (i + 3 * h) * 4                         # b1, b2, gamma, beta (<= f32)
    io = 2 * tm * h * 4 + 2 * tm * h * out_bytes     # double-buffered x / out tiles
    interm = tm * i * (4 + 2) + 3 * tm * h * 4       # h (f32 + bf16 view) + z temps
    est = weights + params + io + interm + (4 << 20)
    # Never request more than physical VMEM (minus headroom); never starve
    # the compiler either.
    return int(min(cap - (8 << 20), max(est, 32 << 20)))


def _bert_fcn_kernel(x_ref, w1_ref, b1_ref, w2_ref, b2_ref, g_ref, beta_ref,
                     o_ref, *, eps, approximate_gelu, gelu_dtype):
    # Load the x tile exactly once; both views derive from that single load.
    xv = x_ref[...]                                   # [TM, H]
    x_f32 = xv.astype(jnp.float32)
    x_bf = xv.astype(jnp.bfloat16)

    # ---- BertIntermediate: Linear(H -> I) + GELU -------------------------
    # bf16 operands on the MXU, f32 accumulation.
    h = jnp.dot(x_bf, w1_ref[...], preferred_element_type=jnp.float32)
    h = h.astype(gelu_dtype) + b1_ref[...]            # bias add in gelu_dtype
    if approximate_gelu:
        # tanh form: transcendental goes to the EUP; elementwise stays in
        # gelu_dtype (bf16 halves VALU issue count on v6e/v7x).
        inner = 0.7978845608028654 * (h + 0.044715 * (h * h * h))
        h = 0.5 * h * (1.0 + jnp.tanh(inner))
    else:
        # exact erf GELU: matches torch nn.GELU(approximate='none').
        hf = h.astype(jnp.float32)
        h = (0.5 * hf * (1.0 + lax.erf(hf * 0.7071067811865476))).astype(gelu_dtype)

    # ---- BertOutput: Linear(I -> H) + residual + LayerNorm ---------------
    y = jnp.dot(h.astype(jnp.bfloat16), w2_ref[...],
                preferred_element_type=jnp.float32)
    z = y + b2_ref[...] + x_f32                       # residual add (f32)

    # LayerNorm with single-pass variance: E[z^2] - mean^2. Avoids the extra
    # full [TM, H] (z - mean) pass and lets the two lane reductions overlap.
    mean = jnp.mean(z, axis=-1, keepdims=True)
    mean_sq = jnp.mean(z * z, axis=-1, keepdims=True)
    var = jnp.maximum(mean_sq - mean * mean, 0.0)     # guard f32 cancellation
    zn = (z - mean) * lax.rsqrt(var + eps)
    o_ref[...] = (zn * g_ref[...] + beta_ref[...]).astype(o_ref.dtype)


def bert_fcn(x, w1, b1, w2, b2, gamma, beta, *, eps=1e-12, block_rows=None,
             approximate_gelu=False, gelu_dtype=jnp.float32, out_dtype=None):
    """x: [B, S, H] float32. Weights as [in, out]. Returns (layer_output,).

    gelu_dtype=jnp.bfloat16 + approximate_gelu=True is the v6e/v7x fast path
    (bf16 VPU + EUP tanh); defaults keep exact f32 erf GELU semantics.
    """
    B, S, H = x.shape
    I = w1.shape[1]
    assert H % 128 == 0, "hidden size must be a multiple of 128 (lanes)"
    assert I % 128 == 0, "intermediate size must be a multiple of 128 (lanes)"

    out_dtype = x.dtype if out_dtype is None else out_dtype
    out_bytes = jnp.dtype(out_dtype).itemsize

    M = B * S
    x2 = x.reshape(M, H)

    vmem_cap = _vmem_capacity_bytes()
    if block_rows is None:
        # 64 MiB/TC (v7x): 256-row tiles; 128 MiB (v5e/v6e): 512-row tiles.
        block_rows = 256 if vmem_cap <= (64 << 20) else 512

    # Row tile: multiple of 8 (f32 sublane), capped by block_rows.
    TM = min(block_rows, _round_up(M, 8))
    M_pad = _round_up(M, TM)
    if M_pad != M:
        x2 = jnp.pad(x2, ((0, M_pad - M), (0, 0)))
    grid_m = pl.cdiv(M_pad, TM)

    # Weights stored bf16 (halves HBM->VMEM DMA + VMEM footprint); small
    # per-channel params presented as [1, N] slabs. b1 in gelu_dtype so the
    # bias add stays in the GELU compute dtype.
    w1_bf = w1.astype(jnp.bfloat16)
    w2_bf = w2.astype(jnp.bfloat16)
    b1_2 = b1.reshape(1, I).astype(gelu_dtype)
    b2_2 = b2.reshape(1, H).astype(jnp.float32)
    g_2 = gamma.reshape(1, H).astype(jnp.float32)
    beta_2 = beta.reshape(1, H).astype(jnp.float32)

    cost = pl.CostEstimate(
        flops=4 * M_pad * H * I,                 # two matmuls
        transcendentals=M_pad * I,               # GELU
        bytes_accessed=(M_pad * H * 4 + M_pad * H * out_bytes
                        + 2 * H * I * 2 + (I + 3 * H) * 4),
    )

    out = pl.pallas_call(
        functools.partial(_bert_fcn_kernel, eps=eps,
                          approximate_gelu=approximate_gelu,
                          gelu_dtype=gelu_dtype),
        out_shape=jax.ShapeDtypeStruct((M_pad, H), out_dtype),
        grid=(grid_m,),
        in_specs=[
            pl.BlockSpec((TM, H), lambda i: (i, 0)),  # x tile (double-buffered)
            _resident_spec((H, I)),                   # W1 (VMEM-resident, 1 buf)
            _resident_spec((1, I)),                   # b1
            _resident_spec((I, H)),                   # W2 (VMEM-resident, 1 buf)
            _resident_spec((1, H)),                   # b2
            _resident_spec((1, H)),                   # gamma
            _resident_spec((1, H)),                   # beta
        ],
        out_specs=pl.BlockSpec((TM, H), lambda i: (i, 0)),
        compiler_params=pltpu.CompilerParams(
            dimension_semantics=("parallel",),
            vmem_limit_bytes=_vmem_limit_bytes(TM, H, I, vmem_cap, out_bytes),
        ),
        cost_estimate=cost,
    )(x2, w1_bf, b1_2, w2_bf, b2_2, g_2, beta_2)

    out = out[:M].reshape(B, S, H)
    return (out,)


def _reference(x, w1, b1, w2, b2, gamma, beta, eps=1e-12, bf16_matmul=False):
    if bf16_matmul:
        h = jnp.dot(x.astype(jnp.bfloat16), w1.astype(jnp.bfloat16),
                    preferred_element_type=jnp.float32) + b1
    else:
        h = x @ w1 + b1
    h = 0.5 * h * (1.0 + lax.erf(h * 0.7071067811865476))
    if bf16_matmul:
        y = jnp.dot(h.astype(jnp.bfloat16), w2.astype(jnp.bfloat16),
                    preferred_element_type=jnp.float32) + b2
    else:
        y = h @ w2 + b2
    z = y + x
    mean = jnp.mean(z, axis=-1, keepdims=True)
    var = jnp.mean((z - mean) ** 2, axis=-1, keepdims=True)
    zn = (z - mean) * lax.rsqrt(var + eps)
    return zn * gamma + beta


if __name__ == "__main__":
    # Small BERT-ish config: batch=2, seq=8, hidden=128, intermediate=512.
    B, S, H, I = 2, 8, 128, 512

    key = jax.random.PRNGKey(0)
    kx, k1, kb1, k2, kb2 = jax.random.split(key, 5)

    x = jax.random.normal(kx, (B, S, H), dtype=jnp.float32)
    w1 = jax.random.normal(k1, (H, I), dtype=jnp.float32) * 0.02
    b1 = jax.random.normal(kb1, (I,), dtype=jnp.float32) * 0.02
    w2 = jax.random.normal(k2, (I, H), dtype=jnp.float32) * 0.02
    b2 = jax.random.normal(kb2, (H,), dtype=jnp.float32) * 0.02
    gamma = jnp.ones((H,), dtype=jnp.float32)
    beta = jnp.zeros((H,), dtype=jnp.float32)

    # Default path: exact erf GELU in f32 (matches torch GELU semantics).
    (out,) = bert_fcn(x, w1, b1, w2, b2, gamma, beta)
    out = jax.block_until_ready(out)
    assert out.shape == (B, S, H)
    assert jnp.all(jnp.isfinite(out)), "non-finite output"

    ref_f32 = _reference(x.reshape(B * S, H), w1, b1, w2, b2, gamma, beta)
    # Loose check vs exact-f32 reference (bf16 MXU operands introduce ~1e-3).
    assert jnp.allclose(out.reshape(B * S, H), ref_f32, atol=3e-2, rtol=3e-2), \
        "mismatch vs f32 reference"

    # Tight check vs a reference that also uses bf16 matmul operands.
    ref_bf = _reference(x.reshape(B * S, H), w1, b1, w2, b2, gamma, beta,
                        bf16_matmul=True)
    assert jnp.allclose(out.reshape(B * S, H), ref_bf, atol=2e-3, rtol=2e-3), \
        "mismatch vs bf16-matmul reference"

    # Exercise the v6e/v7x fast path (bf16 elementwise + tanh GELU); numerics
    # differ from exact erf/f32 at the few-percent level by construction.
    (out_fast,) = bert_fcn(x, w1, b1, w2, b2, gamma, beta,
                           approximate_gelu=True, gelu_dtype=jnp.bfloat16)
    out_fast = jax.block_until_ready(out_fast)
    assert out_fast.shape == (B, S, H)
    assert jnp.all(jnp.isfinite(out_fast)), "non-finite output (fast path)"
    assert jnp.allclose(out_fast.reshape(B * S, H), ref_f32,
                        atol=5e-2, rtol=5e-2), "fast path diverged"

    print("KERNEL_OK")
</pallas_src>

<mosaic_0001>
module attributes {stable_mosaic.version = 11 : i64} {
  func.func @_bert_fcn_kernel(%arg0: i32, %arg1: memref<16x128xf32, #tpu.memory_space<vmem>>, %arg2: memref<128x512xbf16, #tpu.memory_space<vmem>>, %arg3: memref<1x512xf32, #tpu.memory_space<vmem>>, %arg4: memref<512x128xbf16, #tpu.memory_space<vmem>>, %arg5: memref<1x128xf32, #tpu.memory_space<vmem>>, %arg6: memref<1x128xf32, #tpu.memory_space<vmem>>, %arg7: memref<1x128xf32, #tpu.memory_space<vmem>>, %arg8: memref<16x128xf32, #tpu.memory_space<vmem>>) attributes {dimension_semantics = [#tpu.dimension_semantics<parallel>], iteration_bounds = array<i64: 1>, scalar_prefetch = 0 : i64, scratch_operands = 0 : i64, tpu.core_type = #tpu.core_type<tc>, window_params = [{transform_indices = @transform_0, window_bounds = array<i64: 16, 128>}, {pipeline_mode = #tpu.pipeline_mode<synchronous>, transform_indices = @transform_1, window_bounds = array<i64: 128, 512>}, {pipeline_mode = #tpu.pipeline_mode<synchronous>, transform_indices = @transform_2, window_bounds = array<i64: 1, 512>}, {pipeline_mode = #tpu.pipeline_mode<synchronous>, transform_indices = @transform_3, window_bounds = array<i64: 512, 128>}, {pipeline_mode = #tpu.pipeline_mode<synchronous>, transform_indices = @transform_4, window_bounds = array<i64: 1, 128>}, {pipeline_mode = #tpu.pipeline_mode<synchronous>, transform_indices = @transform_5, window_bounds = array<i64: 1, 128>}, {pipeline_mode = #tpu.pipeline_mode<synchronous>, transform_indices = @transform_6, window_bounds = array<i64: 1, 128>}, {transform_indices = @transform_7, window_bounds = array<i64: 16, 128>}]} {
    %c0 = arith.constant 0 : index
    %c0_0 = arith.constant 0 : index
    %0 = vector.load %arg1[%c0, %c0_0] : memref<16x128xf32, #tpu.memory_space<vmem>>, vector<16x128xf32>
    %1 = arith.truncf %0 : vector<16x128xf32> to vector<16x128xbf16>
    %c0_1 = arith.constant 0 : index
    %c0_2 = arith.constant 0 : index
    %2 = vector.load %arg2[%c0_1, %c0_2] : memref<128x512xbf16, #tpu.memory_space<vmem>>, vector<128x512xbf16>
    %cst = arith.constant dense<0.000000e+00> : vector<16x512xf32>
    %3 = tpu.matmul %1, %2, %cst {dimension_numbers = #tpu.dot_dimension_numbers<[1], [0], [0], [1], [0, 0, 1, 1], [], []>} : vector<16x128xbf16>, vector<128x512xbf16>, vector<16x512xf32> -> vector<16x512xf32>
    %c0_3 = arith.constant 0 : index
    %c0_4 = arith.constant 0 : index
    %4 = vector.load %arg3[%c0_3, %c0_4] : memref<1x512xf32, #tpu.memory_space<vmem>>, vector<1x512xf32>
    %5 = vector.broadcast %4 : vector<1x512xf32> to vector<16x512xf32>
    %6 = arith.addf %3, %5 : vector<16x512xf32>
    %cst_5 = arith.constant 5.000000e-01 : f32
    %7 = vector.broadcast %cst_5 : f32 to vector<16x512xf32>
    %8 = arith.mulf %7, %6 : vector<16x512xf32>
    %cst_6 = arith.constant 0.707106769 : f32
    %9 = vector.broadcast %cst_6 : f32 to vector<16x512xf32>
    %10 = arith.mulf %6, %9 : vector<16x512xf32>
    %11 = math.erf %10 : vector<16x512xf32>
    %cst_7 = arith.constant 1.000000e+00 : f32
    %12 = vector.broadcast %cst_7 : f32 to vector<16x512xf32>
    %13 = arith.addf %12, %11 : vector<16x512xf32>
    %14 = arith.mulf %8, %13 : vector<16x512xf32>
    %15 = arith.truncf %14 : vector<16x512xf32> to vector<16x512xbf16>
    %c0_8 = arith.constant 0 : index
    %c0_9 = arith.constant 0 : index
    %16 = vector.load %arg4[%c0_8, %c0_9] : memref<512x128xbf16, #tpu.memory_space<vmem>>, vector<512x128xbf16>
    %cst_10 = arith.constant dense<0.000000e+00> : vector<16x128xf32>
    %17 = tpu.matmul %15, %16, %cst_10 {dimension_numbers = #tpu.dot_dimension_numbers<[1], [0], [0], [1], [0, 0, 1, 1], [], []>} : vector<16x512xbf16>, vector<512x128xbf16>, vector<16x128xf32> -> vector<16x128xf32>
    %c0_11 = arith.constant 0 : index
    %c0_12 = arith.constant 0 : index
    %18 = vector.load %arg5[%c0_11, %c0_12] : memref<1x128xf32, #tpu.memory_space<vmem>>, vector<1x128xf32>
    %19 = vector.broadcast %18 : vector<1x128xf32> to vector<16x128xf32>
    %20 = arith.addf %17, %19 : vector<16x128xf32>
    %21 = arith.addf %20, %0 : vector<16x128xf32>
    %cst_13 = arith.constant dense<0.000000e+00> : vector<16xf32>
    %22 = vector.multi_reduction <add>, %21, %cst_13 [1] : vector<16x128xf32> to vector<16xf32>
    %23 = vector.shape_cast %22 : vector<16xf32> to vector<16x1xf32>
    %cst_14 = arith.constant 1.280000e+02 : f32
    %24 = vector.broadcast %cst_14 : f32 to vector<16x1xf32>
    %25 = arith.divf %23, %24 : vector<16x1xf32>
    %26 = arith.mulf %21, %21 : vector<16x128xf32>
    %cst_15 = arith.constant dense<0.000000e+00> : vector<16xf32>
    %27 = vector.multi_reduction <add>, %26, %cst_15 [1] : vector<16x128xf32> to vector<16xf32>
    %28 = vector.shape_cast %27 : vector<16xf32> to vector<16x1xf32>
    %cst_16 = arith.constant 1.280000e+02 : f32
    %29 = vector.broadcast %cst_16 : f32 to vector<16x1xf32>
    %30 = arith.divf %28, %29 : vector<16x1xf32>
    %31 = arith.mulf %25, %25 : vector<16x1xf32>
    %32 = arith.subf %30, %31 : vector<16x1xf32>
    %cst_17 = arith.constant 0.000000e+00 : f32
    %33 = vector.broadcast %cst_17 : f32 to vector<16x1xf32>
    %34 = arith.maximumf %32, %33 : vector<16x1xf32>
    %35 = vector.broadcast %25 : vector<16x1xf32> to vector<16x128xf32>
    %36 = arith.subf %21, %35 : vector<16x128xf32>
    %cst_18 = arith.constant 9.99999996E-13 : f32
    %37 = vector.broadcast %cst_18 : f32 to vector<16x1xf32>
    %38 = arith.addf %34, %37 : vector<16x1xf32>
    %39 = math.rsqrt %38 : vector<16x1xf32>
    %40 = vector.broadcast %39 : vector<16x1xf32> to vector<16x128xf32>
    %41 = arith.mulf %36, %40 : vector<16x128xf32>
    %c0_19 = arith.constant 0 : index
    %c0_20 = arith.constant 0 : index
    %42 = vector.load %arg6[%c0_19, %c0_20] : memref<1x128xf32, #tpu.memory_space<vmem>>, vector<1x128xf32>
    %43 = vector.broadcast %42 : vector<1x128xf32> to vector<16x128xf32>
    %44 = arith.mulf %41, %43 : vector<16x128xf32>
    %c0_21 = arith.constant 0 : index
    %c0_22 = arith.constant 0 : index
    %45 = vector.load %arg7[%c0_21, %c0_22] : memref<1x128xf32, #tpu.memory_space<vmem>>, vector<1x128xf32>
    %46 = vector.broadcast %45 : vector<1x128xf32> to vector<16x128xf32>
    %47 = arith.addf %44, %46 : vector<16x128xf32>
    %c0_23 = arith.constant 0 : index
    %c0_24 = arith.constant 0 : index
    %48 = vector.load %arg8[%c0_23, %c0_24] : memref<16x128xf32, #tpu.memory_space<vmem>>, vector<16x128xf32>
    tpu.vector_store %arg8[%c0_23, %c0_24], %47 {strides = array<i32>} : memref<16x128xf32, #tpu.memory_space<vmem>>, vector<16x128xf32>,
    return
  }
  func.func @transform_0(%arg0: i32) -> (i32, i32) {
    %c0_i32 = arith.constant 0 : i32
    %c0_i32_0 = arith.constant 0 : i32
    return %arg0, %c0_i32 : i32, i32
  }
  func.func @transform_1(%arg0: i32) -> (i32, i32) {
    %c0_i32 = arith.constant 0 : i32
    %c0_i32_0 = arith.constant 0 : i32
    %c0_i32_1 = arith.constant 0 : i32
    return %c0_i32, %c0_i32_0 : i32, i32
  }
  func.func @transform_2(%arg0: i32) -> (i32, i32) {
    %c0_i32 = arith.constant 0 : i32
    %c0_i32_0 = arith.constant 0 : i32
    %c0_i32_1 = arith.constant 0 : i32
    return %c0_i32, %c0_i32_0 : i32, i32
  }
  func.func @transform_3(%arg0: i32) -> (i32, i32) {
    %c0_i32 = arith.constant 0 : i32
    %c0_i32_0 = arith.constant 0 : i32
    %c0_i32_1 = arith.constant 0 : i32
    return %c0_i32, %c0_i32_0 : i32, i32
  }
  func.func @transform_4(%arg0: i32) -> (i32, i32) {
    %c0_i32 = arith.constant 0 : i32
    %c0_i32_0 = arith.constant 0 : i32
    %c0_i32_1 = arith.constant 0 : i32
    return %c0_i32, %c0_i32_0 : i32, i32
  }
  func.func @transform_5(%arg0: i32) -> (i32, i32) {
    %c0_i32 = arith.constant 0 : i32
    %c0_i32_0 = arith.constant 0 : i32
    %c0_i32_1 = arith.constant 0 : i32
    return %c0_i32, %c0_i32_0 : i32, i32
  }
  func.func @transform_6(%arg0: i32) -> (i32, i32) {
    %c0_i32 = arith.constant 0 : i32
    %c0_i32_0 = arith.constant 0 : i32
    %c0_i32_1 = arith.constant 0 : i32
    return %c0_i32, %c0_i32_0 : i32, i32
  }
  func.func @transform_7(%arg0: i32) -> (i32, i32) {
    %c0_i32 = arith.constant 0 : i32
    %c0_i32_0 = arith.constant 0 : i32
    return %arg0, %c0_i32 : i32, i32
  }
}

</mosaic_0001>

<llo_original>
// kernel: tpu_custom_call.1
$region0: #{tpu_custom_call.1}
  #allocation0 [shape = 'u32[]', space=smem, size = 0x4, offset = 0x4, fixed_abs, tag = 'smem constant byte address 0x4 - core index']
  #allocation1 [shape = 'u32[144,128]{1,0:T(1,128)}', space=vmem, size = 0x12000, scoped, tag = 'internal scratch']
  %s0 = inlined_call_operand.hbm [shape: f32[16,128], index: 0, kind: input, shape index: {}]
  %s1 = inlined_call_operand.hbm [shape: bf16[128,512], index: 1, kind: input, shape index: {}]
  %s2 = inlined_call_operand.hbm [shape: f32[1,512], index: 2, kind: input, shape index: {}]
  %s3 = inlined_call_operand.hbm [shape: bf16[512,128], index: 3, kind: input, shape index: {}]
  %s4 = inlined_call_operand.vmem [shape: f32[1,128], index: 4, kind: input, shape index: {}]
  %s5 = inlined_call_operand.vmem [shape: f32[1,128], index: 5, kind: input, shape index: {}]
  %s6 = inlined_call_operand.vmem [shape: f32[1,128], index: 6, kind: input, shape index: {}]
  %s7 = inlined_call_operand.hbm [shape: f32[16,128], index: 7, kind: output, shape index: {}]
  %s8 = sld [smem:[#allocation0]]
  $region54: #{tpu_custom_call.1} parent=0
    _
  %s10 = ssub.s32 1, %s8
  %s11 = scalar_select 0, %s10, %s8
  $region1: #{tpu_custom_call.1} parent=0
    #allocation2 [shape = 'u8[8192]{0}', space=vmem, size = 0x2000, scoped, tag = 'input window, operand 0, single buffered']
    #allocation3 [shape = 's32[1]{0}', space=sflag, size = 0x4, scoped, tag = 'scoped memory for tpu_custom_call.1']
    #allocation4 [shape = 's32[1]{0}', space=sflag, size = 0x4, scoped, tag = 'scoped memory for tpu_custom_call.1']
    #allocation5 [shape = 'u8[131072]{0}', space=vmem, size = 0x20000, scoped, tag = 'input window, operand 1, single buffered']
    #allocation6 [shape = 's32[1]{0}', space=sflag, size = 0x4, scoped, tag = 'scoped memory for tpu_custom_call.1']
    #allocation7 [shape = 'u8[2048]{0}', space=vmem, size = 0x800, scoped, tag = 'input window, operand 2, single buffered']
    #allocation8 [shape = 'u8[131072]{0}', space=vmem, size = 0x20000, scoped, tag = 'input window, operand 3, single buffered']
    #allocation9 [shape = 's32[1]{0}', space=sflag, size = 0x4, scoped, tag = 'scoped memory for tpu_custom_call.1']
    #allocation10 [shape = 'u8[8192]{0}', space=vmem, size = 0x2000, scoped, tag = 'output window, operand 0, single buffered']
    %12 = vsyncpa [#allocation3], 0
    %13 = vsyncpa [#allocation6], 0
    %14 = vsyncpa [#allocation9], 0
    %15 = vsyncpa [#allocation4], 0
    // Predicated region
    $region2: #{tpu_custom_call.1} parent=1 // pred_check
      _
    $region3: #{tpu_custom_call.1} parent=1 // pred_check_branch
      %17 = sbr.rel (0) target = $region5
    $region4: #{tpu_custom_call.1} parent=1 // pred_region
      %s19 = ssub.s32 256, 256
      %20 = vsyncadd [#allocation3], %s19
      %s21 = sshll.u32 [#allocation2], 4
      %s22 = int_to_ptr.vmem [resolvable:$true] %s21
      %27 = dma.hbm_to_vmem [thread:$0]  %s0, 256, %s22, [#allocation3], 128, 128, 8
    $region5: #{tpu_custom_call.1} parent=1 // pred_fallthru
      _
    // Predicated region
    $region6: #{tpu_custom_call.1} parent=1 // pred_check
      _
    $region7: #{tpu_custom_call.1} parent=1 // pred_check_branch
      %29 = sbr.rel (0) target = $region9
    $region8: #{tpu_custom_call.1} parent=1 // pred_region
      %s31 = ssub.s32 4096, 4096
      %32 = vsyncadd [#allocation6], %s31
      %s33 = sshll.u32 [#allocation5], 4
      %s34 = int_to_ptr.vmem [resolvable:$true] %s33
      %39 = dma.hbm_to_vmem [thread:$0]  %s1, 4096, %s34, [#allocation6], 256, 256, 16
    $region9: #{tpu_custom_call.1} parent=1 // pred_fallthru
      _
    // Predicated region
    $region10: #{tpu_custom_call.1} parent=1 // pred_check
      _
    $region11: #{tpu_custom_call.1} parent=1 // pred_check_branch
      %41 = sbr.rel (0) target = $region13
    $region12: #{tpu_custom_call.1} parent=1 // pred_region
      %s43 = ssub.s32 64, 64
      %44 = vsyncadd [#allocation6], %s43
      %s46 = sshll.u32 [#allocation7], 4
      %s47 = int_to_ptr.vmem [resolvable:$true] %s46
      %49 = dma.hbm_to_vmem [thread:$0]  %s2, 64, %s47, [#allocation6]
    $region13: #{tpu_custom_call.1} parent=1 // pred_fallthru
      _
    // Predicated region
    $region14: #{tpu_custom_call.1} parent=1 // pred_check
      _
    $region15: #{tpu_custom_call.1} parent=1 // pred_check_branch
      %51 = sbr.rel (0) target = $region17
    $region16: #{tpu_custom_call.1} parent=1 // pred_region
      %s53 = ssub.s32 4096, 4096
      %54 = vsyncadd [#allocation9], %s53
      %s55 = sshll.u32 [#allocation8], 4
      %s56 = int_to_ptr.vmem [resolvable:$true] %s55
      %61 = dma.hbm_to_vmem [thread:$0]  %s3, 4096, %s56, [#allocation9], 64, 64, 4
    $region17: #{tpu_custom_call.1} parent=1 // pred_fallthru
      _
    // Predicated region
    $region18: #{tpu_custom_call.1} parent=1 // pred_check
      _
    $region19: #{tpu_custom_call.1} parent=1 // pred_check_branch
      %63 = sbr.rel (0) target = $region21
    $region20: #{tpu_custom_call.1} parent=1 // pred_region
      _
    $region21: #{tpu_custom_call.1} parent=1 // pred_fallthru
      _
    // Predicated region
    $region22: #{tpu_custom_call.1} parent=1 // pred_check
      _
    $region23: #{tpu_custom_call.1} parent=1 // pred_check_branch
      %65 = sbr.rel (0) target = $region25
    $region24: #{tpu_custom_call.1} parent=1 // pred_region
      _
    $region25: #{tpu_custom_call.1} parent=1 // pred_fallthru
      _
    // Predicated region
    $region26: #{tpu_custom_call.1} parent=1 // pred_check
      _
    $region27: #{tpu_custom_call.1} parent=1 // pred_check_branch
      %67 = sbr.rel (0) target = $region29
    $region28: #{tpu_custom_call.1} parent=1 // pred_region
      _
    $region29: #{tpu_custom_call.1} parent=1 // pred_fallthru
      _
    // Predicated region
    $region30: #{tpu_custom_call.1} parent=1 // pred_check
      _
    $region31: #{tpu_custom_call.1} parent=1 // pred_check_branch
      %69 = sbr.rel (0) target = $region33
    $region32: #{tpu_custom_call.1} parent=1 // pred_region
      %70 = dma.done [#allocation3], 256
    $region33: #{tpu_custom_call.1} parent=1 // pred_fallthru
      _
    // Predicated region
    $region34: #{tpu_custom_call.1} parent=1 // pred_check
      _
    $region35: #{tpu_custom_call.1} parent=1 // pred_check_branch
      %72 = sbr.rel (0) target = $region37
    $region36: #{tpu_custom_call.1} parent=1 // pred_region
      %73 = dma.done [#allocation6], 4096
    $region37: #{tpu_custom_call.1} parent=1 // pred_fallthru
      _
    // Predicated region
    $region38: #{tpu_custom_call.1} parent=1 // pred_check
      _
    $region39: #{tpu_custom_call.1} parent=1 // pred_check_branch
      %75 = sbr.rel (0) target = $region41
    $region40: #{tpu_custom_call.1} parent=1 // pred_region
      %76 = dma.done [#allocation6], 64
    $region41: #{tpu_custom_call.1} parent=1 // pred_fallthru
      _
    // Predicated region
    $region42: #{tpu_custom_call.1} parent=1 // pred_check
      _
    $region43: #{tpu_custom_call.1} parent=1 // pred_check_branch
      %78 = sbr.rel (0) target = $region45
    $region44: #{tpu_custom_call.1} parent=1 // pred_region
      %79 = dma.done [#allocation9], 4096
    $region45: #{tpu_custom_call.1} parent=1 // pred_fallthru
      _
    %v81 = vld [vmem:[#allocation2] sm:$0xff]
    %v82 = vld [vmem:[#allocation2 + $0x8] sm:$0xff]
    %v83 = vpack.c.bf16 %v82, %v81
    %v84 = vld [vmem:[#allocation5] sm:$0xff]
    %v85 = vld [vmem:[#allocation5 + $0x8] sm:$0xff]
    %v86 = vld [vmem:[#allocation5 + $0x10] sm:$0xff]
    %v87 = vld [vmem:[#allocation5 + $0x18] sm:$0xff]
    %v88 = vld [vmem:[#allocation5 + $0x20] sm:$0xff]
    %v89 = vld [vmem:[#allocation5 + $0x28] sm:$0xff]
    %v90 = vld [vmem:[#allocation5 + $0x30] sm:$0xff]
    %v91 = vld [vmem:[#allocation5 + $0x38] sm:$0xff]
    %v92 = vld [vmem:[#allocation5 + $0x40] sm:$0xff]
    %v93 = vld [vmem:[#allocation5 + $0x48] sm:$0xff]
    %v94 = vld [vmem:[#allocation5 + $0x50] sm:$0xff]
    %v95 = vld [vmem:[#allocation5 + $0x58] sm:$0xff]
    %v96 = vld [vmem:[#allocation5 + $0x60] sm:$0xff]
    %v97 = vld [vmem:[#allocation5 + $0x68] sm:$0xff]
    %v98 = vld [vmem:[#allocation5 + $0x70] sm:$0xff]
    %v99 = vld [vmem:[#allocation5 + $0x78] sm:$0xff]
    %v100 = vld [vmem:[#allocation5 + $0x80] sm:$0xff]
    %v101 = vld [vmem:[#allocation5 + $0x88] sm:$0xff]
    %v102 = vld [vmem:[#allocation5 + $0x90] sm:$0xff]
    %v103 = vld [vmem:[#allocation5 + $0x98] sm:$0xff]
    %v104 = vld [vmem:[#allocation5 + $0xa0] sm:$0xff]
    %v105 = vld [vmem:[#allocation5 + $0xa8] sm:$0xff]
    %v106 = vld [vmem:[#allocation5 + $0xb0] sm:$0xff]
    %v107 = vld [vmem:[#allocation5 + $0xb8] sm:$0xff]
    %v108 = vld [vmem:[#allocation5 + $0xc0] sm:$0xff]
    %v109 = vld [vmem:[#allocation5 + $0xc8] sm:$0xff]
    %v110 = vld [vmem:[#allocation5 + $0xd0] sm:$0xff]
    %v111 = vld [vmem:[#allocation5 + $0xd8] sm:$0xff]
    %v112 = vld [vmem:[#allocation5 + $0xe0] sm:$0xff]
    %v113 = vld [vmem:[#allocation5 + $0xe8] sm:$0xff]
    %v114 = vld [vmem:[#allocation5 + $0xf0] sm:$0xff]
    %v115 = vld [vmem:[#allocation5 + $0xf8] sm:$0xff]
    %v116 = vld [vmem:[#allocation7] sm:$0xf]
    %v118 = vlaneseq
    %v119 = vshrl.u32 %v118, 7
    %v120 = vsub.s32 0, %v119
    %v121 = vrot.slane %v116, %v120
    %v122 = vlaneseq
    %v123 = vshrl.u32 %v122, 7
    %v124 = vsub.s32 1, %v123
    %v125 = vrot.slane %v116, %v124
    %v126 = vlaneseq
    %v127 = vshrl.u32 %v126, 7
    %v128 = vsub.s32 2, %v127
    %v129 = vrot.slane %v116, %v128
    %v130 = vlaneseq
    %v131 = vshrl.u32 %v130, 7
    %v132 = vsub.s32 3, %v131
    %v133 = vrot.slane %v116, %v132
    %v170 = vunpack.c.l.b16 %v84
    %v171 = vunpack.c.h.b16 %v84
    %v172 = vunpack.c.l.b16 %v85
    %v173 = vunpack.c.h.b16 %v85
    %v174 = vunpack.c.l.b16 %v86
    %v175 = vunpack.c.h.b16 %v86
    %v176 = vunpack.c.l.b16 %v87
    %v177 = vunpack.c.h.b16 %v87
    %v178 = vunpack.c.l.b16 %v88
    %v179 = vunpack.c.h.b16 %v88
    %v180 = vunpack.c.l.b16 %v89
    %v181 = vunpack.c.h.b16 %v89
    %v182 = vunpack.c.l.b16 %v90
    %v183 = vunpack.c.h.b16 %v90
    %v184 = vunpack.c.l.b16 %v91
    %v185 = vunpack.c.h.b16 %v91
    %v186 = vunpack.c.l.b16 %v92
    %v187 = vunpack.c.h.b16 %v92
    %v188 = vunpack.c.l.b16 %v93
    %v189 = vunpack.c.h.b16 %v93
    %v190 = vunpack.c.l.b16 %v94
    %v191 = vunpack.c.h.b16 %v94
    %v192 = vunpack.c.l.b16 %v95
    %v193 = vunpack.c.h.b16 %v95
    %v194 = vunpack.c.l.b16 %v96
    %v195 = vunpack.c.h.b16 %v96
    %v196 = vunpack.c.l.b16 %v97
    %v197 = vunpack.c.h.b16 %v97
    %v198 = vunpack.c.l.b16 %v98
    %v199 = vunpack.c.h.b16 %v98
    %v200 = vunpack.c.l.b16 %v99
    %v201 = vunpack.c.h.b16 %v99
    %v202 = vunpack.c.l.b16 %v100
    %v203 = vunpack.c.h.b16 %v100
    %v204 = vunpack.c.l.b16 %v101
    %v205 = vunpack.c.h.b16 %v101
    %v206 = vunpack.c.l.b16 %v102
    %v207 = vunpack.c.h.b16 %v102
    %v208 = vunpack.c.l.b16 %v103
    %v209 = vunpack.c.h.b16 %v103
    %v210 = vunpack.c.l.b16 %v104
    %v211 = vunpack.c.h.b16 %v104
    %v212 = vunpack.c.l.b16 %v105
    %v213 = vunpack.c.h.b16 %v105
    %v214 = vunpack.c.l.b16 %v106
    %v215 = vunpack.c.h.b16 %v106
    %v216 = vunpack.c.l.b16 %v107
    %v217 = vunpack.c.h.b16 %v107
    %v218 = vunpack.c.l.b16 %v108
    %v219 = vunpack.c.h.b16 %v108
    %v220 = vunpack.c.l.b16 %v109
    %v221 = vunpack.c.h.b16 %v109
    %v222 = vunpack.c.l.b16 %v110
    %v223 = vunpack.c.h.b16 %v110
    %v224 = vunpack.c.l.b16 %v111
    %v225 = vunpack.c.h.b16 %v111
    %v226 = vunpack.c.l.b16 %v112
    %v227 = vunpack.c.h.b16 %v112
    %v228 = vunpack.c.l.b16 %v113
    %v229 = vunpack.c.h.b16 %v113
    %v230 = vunpack.c.l.b16 %v114
    %v231 = vunpack.c.h.b16 %v114
    %v232 = vunpack.c.l.b16 %v115
    %v233 = vunpack.c.h.b16 %v115
    %v234 = vpack.c.b16 %v174, %v170
    %v235 = vpack.c.b16 %v175, %v171
    %v236 = vpack.c.b16 %v176, %v172
    %v237 = vpack.c.b16 %v177, %v173
    %v238 = vpack.c.b16 %v182, %v178
    %v239 = vpack.c.b16 %v183, %v179
    %v240 = vpack.c.b16 %v184, %v180
    %v241 = vpack.c.b16 %v185, %v181
    %v242 = vpack.c.b16 %v190, %v186
    %v243 = vpack.c.b16 %v191, %v187
    %v244 = vpack.c.b16 %v192, %v188
    %v245 = vpack.c.b16 %v193, %v189
    %v246 = vpack.c.b16 %v198, %v194
    %v247 = vpack.c.b16 %v199, %v195
    %v248 = vpack.c.b16 %v200, %v196
    %v249 = vpack.c.b16 %v201, %v197
    %v250 = vpack.c.b16 %v206, %v202
    %v251 = vpack.c.b16 %v207, %v203
    %v252 = vpack.c.b16 %v208, %v204
    %v253 = vpack.c.b16 %v209, %v205
    %v254 = vpack.c.b16 %v214, %v210
    %v255 = vpack.c.b16 %v215, %v211
    %v256 = vpack.c.b16 %v216, %v212
    %v257 = vpack.c.b16 %v217, %v213
    %v258 = vpack.c.b16 %v222, %v218
    %v259 = vpack.c.b16 %v223, %v219
    %v260 = vpack.c.b16 %v224, %v220
    %v261 = vpack.c.b16 %v225, %v221
    %v262 = vpack.c.b16 %v230, %v226
    %v263 = vpack.c.b16 %v231, %v227
    %v264 = vpack.c.b16 %v232, %v228
    %v265 = vpack.c.b16 %v233, %v229
    %298 = vmatprep.subr.bf16.mxu0 %v263
    %299 = vmatpush1.bf16.msra.mxu0 %v262
    %300 = vmatprep.subr.bf16.mxu0 %v259
    %301 = vmatpush1.bf16.msra.mxu0 %v258
    %302 = vmatprep.subr.bf16.mxu0 %v255
    %303 = vmatpush1.bf16.msra.mxu0 %v254
    %304 = vmatprep.subr.bf16.mxu0 %v251
    %305 = vmatpush1.bf16.msra.mxu0 %v250
    %306 = vmatprep.subr.bf16.mxu0 %v247
    %307 = vmatpush1.bf16.msra.mxu0 %v246
    %308 = vmatprep.subr.bf16.mxu0 %v243
    %309 = vmatpush1.bf16.msra.mxu0 %v242
    %310 = vmatprep.subr.bf16.mxu0 %v239
    %311 = vmatpush1.bf16.msra.mxu0 %v238
    %312 = vmatprep.subr.bf16.mxu0 %v235
    %313 = vmatpush1.bf16.msra.mxu0 %v234
    %314 = vmatprep.subr.bf16.mxu0 0
    %315 = vmatpush2.bf16.msra.mxu0 0
    %316 = vmatprep.subr.bf16.mxu0 0
    %317 = vmatpush2.bf16.msra.mxu0 0
    %318 = vmatprep.subr.bf16.mxu0 0
    %319 = vmatpush2.bf16.msra.mxu0 0
    %320 = vmatprep.subr.bf16.mxu0 0
    %321 = vmatpush2.bf16.msra.mxu0 0
    %322 = vmatprep.subr.bf16.mxu0 0
    %323 = vmatpush2.bf16.msra.mxu0 0
    %324 = vmatprep.subr.bf16.mxu0 0
    %325 = vmatpush2.bf16.msra.mxu0 0
    %326 = vmatprep.subr.bf16.mxu0 0
    %327 = vmatpush2.bf16.msra.mxu0 0
    %328 = vmatprep.subr.bf16.mxu0 0
    %329 = vmatpush2.bf16.msra.mxu0 0
    %330 = vmatprep.mubr.bf16.mxu0 0
    %331 = vmatmul.mubr.bf16.gmra.mxu0 %v83
    %v332 = vpop.f32.mrf.mxu0
    %v333 = vadd.f32 %v121, %v332
    %v334 = vpop.f32.mrf.mxu0
    %v335 = vadd.f32 %v125, %v334
    %v336 = vpop.f32.mrf.mxu0
    %v337 = vadd.f32 %v121, %v336
    %v338 = vpop.f32.mrf.mxu0
    %v339 = vadd.f32 %v125, %v338
    %340 = vdwg.mxu0
    %341 = vmatprep.subr.bf16.mxu0 %v265
    %342 = vmatpush1.bf16.msra.mxu0 %v264
    %343 = vmatprep.subr.bf16.mxu0 %v261
    %344 = vmatpush1.bf16.msra.mxu0 %v260
    %345 = vmatprep.subr.bf16.mxu0 %v257
    %346 = vmatpush1.bf16.msra.mxu0 %v256
    %347 = vmatprep.subr.bf16.mxu0 %v253
    %348 = vmatpush1.bf16.msra.mxu0 %v252
    %349 = vmatprep.subr.bf16.mxu0 %v249
    %350 = vmatpush1.bf16.msra.mxu0 %v248
    %351 = vmatprep.subr.bf16.mxu0 %v245
    %352 = vmatpush1.bf16.msra.mxu0 %v244
    %353 = vmatprep.subr.bf16.mxu0 %v241
    %354 = vmatpush1.bf16.msra.mxu0 %v240
    %355 = vmatprep.subr.bf16.mxu0 %v237
    %356 = vmatpush1.bf16.msra.mxu0 %v236
    %357 = vmatprep.subr.bf16.mxu0 0
    %358 = vmatpush2.bf16.msra.mxu0 0
    %359 = vmatprep.subr.bf16.mxu0 0
    %360 = vmatpush2.bf16.msra.mxu0 0
    %361 = vmatprep.subr.bf16.mxu0 0
    %362 = vmatpush2.bf16.msra.mxu0 0
    %363 = vmatprep.subr.bf16.mxu0 0
    %364 = vmatpush2.bf16.msra.mxu0 0
    %365 = vmatprep.subr.bf16.mxu0 0
    %366 = vmatpush2.bf16.msra.mxu0 0
    %367 = vmatprep.subr.bf16.mxu0 0
    %368 = vmatpush2.bf16.msra.mxu0 0
    %369 = vmatprep.subr.bf16.mxu0 0
    %370 = vmatpush2.bf16.msra.mxu0 0
    %371 = vmatprep.subr.bf16.mxu0 0
    %372 = vmatpush2.bf16.msra.mxu0 0
    %373 = vmatprep.mubr.bf16.mxu0 0
    %374 = vmatmul.mubr.bf16.gmra.mxu0 %v83
    %v375 = vpop.f32.mrf.mxu0
    %v376 = vadd.f32 %v129, %v375
    %v377 = vpop.f32.mrf.mxu0
    %v378 = vadd.f32 %v133, %v377
    %v379 = vpop.f32.mrf.mxu0
    %v380 = vadd.f32 %v129, %v379
    %v381 = vpop.f32.mrf.mxu0
    %v382 = vadd.f32 %v133, %v381
    %383 = vdwg.mxu0
    %v384 = vmul.f32 %v333, 0.5
    %v385 = vmul.f32 %v335, 0.5
    %v386 = vmul.f32 %v376, 0.5
    %v387 = vmul.f32 %v378, 0.5
    %v388 = vmul.f32 %v337, 0.5
    %v389 = vmul.f32 %v339, 0.5
    %v390 = vmul.f32 %v380, 0.5
    %v391 = vmul.f32 %v382, 0.5
    %v392 = vmul.f32 %v333, 0.70710677
    %v393 = vmul.f32 %v335, 0.70710677
    %v394 = vmul.f32 %v376, 0.70710677
    %v395 = vmul.f32 %v378, 0.70710677
    %v396 = vmul.f32 %v337, 0.70710677
    %v397 = vmul.f32 %v339, 0.70710677
    %v398 = vmul.f32 %v380, 0.70710677
    %v399 = vmul.f32 %v382, 0.70710677
    %v400 = verf.f32.pop %v392
    %v401 = verf.f32.pop %v393
    %v402 = verf.f32.pop %v394
    %v403 = verf.f32.pop %v395
    %v404 = verf.f32.pop %v396
    %v405 = verf.f32.pop %v397
    %v406 = verf.f32.pop %v398
    %v407 = verf.f32.pop %v399
    %v408 = vadd.f32 %v400, 1.0
    %v409 = vadd.f32 %v401, 1.0
    %v410 = vadd.f32 %v402, 1.0
    %v411 = vadd.f32 %v403, 1.0
    %v412 = vadd.f32 %v404, 1.0
    %v413 = vadd.f32 %v405, 1.0
    %v414 = vadd.f32 %v406, 1.0
    %v415 = vadd.f32 %v407, 1.0
    %v416 = vmul.f32 %v384, %v408
    %v417 = vmul.f32 %v385, %v409
    %v418 = vmul.f32 %v386, %v410
    %v419 = vmul.f32 %v387, %v411
    %v420 = vmul.f32 %v388, %v412
    %v421 = vmul.f32 %v389, %v413
    %v422 = vmul.f32 %v390, %v414
    %v423 = vmul.f32 %v391, %v415
    %v424 = vpack.c.bf16 %v420, %v416
    %v425 = vpack.c.bf16 %v421, %v417
    %v426 = vpack.c.bf16 %v422, %v418
    %v427 = vpack.c.bf16 %v423, %v419
    %v428 = vld [vmem:[#allocation8] sm:$0xf]
    %v429 = vld [vmem:[#allocation8 + $0x4] sm:$0xf]
    %v430 = vld [vmem:[#allocation8 + $0x8] sm:$0xf]
    %v431 = vld [vmem:[#allocation8 + $0xc] sm:$0xf]
    %v432 = vld [vmem:[#allocation8 + $0x10] sm:$0xf]
    %v433 = vld [vmem:[#allocation8 + $0x14] sm:$0xf]
    %v434 = vld [vmem:[#allocation8 + $0x18] sm:$0xf]
    %v435 = vld [vmem:[#allocation8 + $0x1c] sm:$0xf]
    %v436 = vld [vmem:[#allocation8 + $0x20] sm:$0xf]
    %v437 = vld [vmem:[#allocation8 + $0x24] sm:$0xf]
    %v438 = vld [vmem:[#allocation8 + $0x28] sm:$0xf]
    %v439 = vld [vmem:[#allocation8 + $0x2c] sm:$0xf]
    %v440 = vld [vmem:[#allocation8 + $0x30] sm:$0xf]
    %v441 = vld [vmem:[#allocation8 + $0x34] sm:$0xf]
    %v442 = vld [vmem:[#allocation8 + $0x38] sm:$0xf]
    %v443 = vld [vmem:[#allocation8 + $0x3c] sm:$0xf]
    %v444 = vld [vmem:[#allocation8 + $0x40] sm:$0xf]
    %v445 = vld [vmem:[#allocation8 + $0x44] sm:$0xf]
    %v446 = vld [vmem:[#allocation8 + $0x48] sm:$0xf]
    %v447 = vld [vmem:[#allocation8 + $0x4c] sm:$0xf]
    %v448 = vld [vmem:[#allocation8 + $0x50] sm:$0xf]
    %v449 = vld [vmem:[#allocation8 + $0x54] sm:$0xf]
    %v450 = vld [vmem:[#allocation8 + $0x58] sm:$0xf]
    %v451 = vld [vmem:[#allocation8 + $0x5c] sm:$0xf]
    %v452 = vld [vmem:[#allocation8 + $0x60] sm:$0xf]
    %v453 = vld [vmem:[#allocation8 + $0x64] sm:$0xf]
    %v454 = vld [vmem:[#allocation8 + $0x68] sm:$0xf]
    %v455 = vld [vmem:[#allocation8 + $0x6c] sm:$0xf]
    %v456 = vld [vmem:[#allocation8 + $0x70] sm:$0xf]
    %v457 = vld [vmem:[#allocation8 + $0x74] sm:$0xf]
    %v458 = vld [vmem:[#allocation8 + $0x78] sm:$0xf]
    %v459 = vld [vmem:[#allocation8 + $0x7c] sm:$0xf]
    %v460 = vld [vmem:[#allocation8 + $0x80] sm:$0xf]
    %v461 = vld [vmem:[#allocation8 + $0x84] sm:$0xf]
    %v462 = vld [vmem:[#allocation8 + $0x88] sm:$0xf]
    %v463 = vld [vmem:[#allocation8 + $0x8c] sm:$0xf]
    %v464 = vld [vmem:[#allocation8 + $0x90] sm:$0xf]
    %v465 = vld [vmem:[#allocation8 + $0x94] sm:$0xf]
    %v466 = vld [vmem:[#allocation8 + $0x98] sm:$0xf]
    %v467 = vld [vmem:[#allocation8 + $0x9c] sm:$0xf]
    %v468 = vld [vmem:[#allocation8 + $0xa0] sm:$0xf]
    %v469 = vld [vmem:[#allocation8 + $0xa4] sm:$0xf]
    %v470 = vld [vmem:[#allocation8 + $0xa8] sm:$0xf]
    %v471 = vld [vmem:[#allocation8 + $0xac] sm:$0xf]
    %v472 = vld [vmem:[#allocation8 + $0xb0] sm:$0xf]
    %v473 = vld [vmem:[#allocation8 + $0xb4] sm:$0xf]
    %v474 = vld [vmem:[#allocation8 + $0xb8] sm:$0xf]
    %v475 = vld [vmem:[#allocation8 + $0xbc] sm:$0xf]
    %v476 = vld [vmem:[#allocation8 + $0xc0] sm:$0xf]
    %v477 = vld [vmem:[#allocation8 + $0xc4] sm:$0xf]
    %v478 = vld [vmem:[#allocation8 + $0xc8] sm:$0xf]
    %v479 = vld [vmem:[#allocation8 + $0xcc] sm:$0xf]
    %v480 = vld [vmem:[#allocation8 + $0xd0] sm:$0xf]
    %v481 = vld [vmem:[#allocation8 + $0xd4] sm:$0xf]
    %v482 = vld [vmem:[#allocation8 + $0xd8] sm:$0xf]
    %v483 = vld [vmem:[#allocation8 + $0xdc] sm:$0xf]
    %v484 = vld [vmem:[#allocation8 + $0xe0] sm:$0xf]
    %v485 = vld [vmem:[#allocation8 + $0xe4] sm:$0xf]
    %v486 = vld [vmem:[#allocation8 + $0xe8] sm:$0xf]
    %v487 = vld [vmem:[#allocation8 + $0xec] sm:$0xf]
    %v488 = vld [vmem:[#allocation8 + $0xf0] sm:$0xf]
    %v489 = vld [vmem:[#allocation8 + $0xf4] sm:$0xf]
    %v490 = vld [vmem:[#allocation8 + $0xf8] sm:$0xf]
    %v491 = vld [vmem:[#allocation8 + $0xfc] sm:$0xf]
    %v492 = vld [vmem:[%s4] sm:$0x1]
    %v494 = vlaneseq
    %v495 = vshrl.u32 %v494, 7
    %v496 = vsub.s32 0, %v495
    %v497 = vrot.slane %v492, %v496
    %v563 = vunpack.c.l.b16 %v428
    %v564 = vunpack.c.l.b16 %v429
    %v565 = vunpack.c.l.b16 %v430
    %v566 = vunpack.c.l.b16 %v431
    %v567 = vunpack.c.l.b16 %v432
    %v568 = vunpack.c.l.b16 %v433
    %v569 = vunpack.c.l.b16 %v434
    %v570 = vunpack.c.l.b16 %v435
    %v571 = vunpack.c.l.b16 %v436
    %v572 = vunpack.c.l.b16 %v437
    %v573 = vunpack.c.l.b16 %v438
    %v574 = vunpack.c.l.b16 %v439
    %v575 = vunpack.c.l.b16 %v440
    %v576 = vunpack.c.l.b16 %v441
    %v577 = vunpack.c.l.b16 %v442
    %v578 = vunpack.c.l.b16 %v443
    %v579 = vunpack.c.l.b16 %v444
    %v580 = vunpack.c.l.b16 %v445
    %v581 = vunpack.c.l.b16 %v446
    %v582 = vunpack.c.l.b16 %v447
    %v583 = vunpack.c.l.b16 %v448
    %v584 = vunpack.c.l.b16 %v449
    %v585 = vunpack.c.l.b16 %v450
    %v586 = vunpack.c.l.b16 %v451
    %v587 = vunpack.c.l.b16 %v452
    %v588 = vunpack.c.l.b16 %v453
    %v589 = vunpack.c.l.b16 %v454
    %v590 = vunpack.c.l.b16 %v455
    %v591 = vunpack.c.l.b16 %v456
    %v592 = vunpack.c.l.b16 %v457
    %v593 = vunpack.c.l.b16 %v458
    %v594 = vunpack.c.l.b16 %v459
    %v595 = vunpack.c.l.b16 %v460
    %v596 = vunpack.c.l.b16 %v461
    %v597 = vunpack.c.l.b16 %v462
    %v598 = vunpack.c.l.b16 %v463
    %v599 = vunpack.c.l.b16 %v464
    %v600 = vunpack.c.l.b16 %v465
    %v601 = vunpack.c.l.b16 %v466
    %v602 = vunpack.c.l.b16 %v467
    %v603 = vunpack.c.l.b16 %v468
    %v604 = vunpack.c.l.b16 %v469
    %v605 = vunpack.c.l.b16 %v470
    %v606 = vunpack.c.l.b16 %v471
    %v607 = vunpack.c.l.b16 %v472
    %v608 = vunpack.c.l.b16 %v473
    %v609 = vunpack.c.l.b16 %v474
    %v610 = vunpack.c.l.b16 %v475
    %v611 = vunpack.c.l.b16 %v476
    %v612 = vunpack.c.l.b16 %v477
    %v613 = vunpack.c.l.b16 %v478
    %v614 = vunpack.c.l.b16 %v479
    %v615 = vunpack.c.l.b16 %v480
    %v616 = vunpack.c.l.b16 %v481
    %v617 = vunpack.c.l.b16 %v482
    %v618 = vunpack.c.l.b16 %v483
    %v619 = vunpack.c.l.b16 %v484
    %v620 = vunpack.c.l.b16 %v485
    %v621 = vunpack.c.l.b16 %v486
    %v622 = vunpack.c.l.b16 %v487
    %v623 = vunpack.c.l.b16 %v488
    %v624 = vunpack.c.l.b16 %v489
    %v625 = vunpack.c.l.b16 %v490
    %v626 = vunpack.c.l.b16 %v491
    %v627 = vpack.c.b16 %v564, %v563
    %v628 = vpack.c.b16 %v566, %v565
    %v629 = vpack.c.b16 %v568, %v567
    %v630 = vpack.c.b16 %v570, %v569
    %v631 = vpack.c.b16 %v572, %v571
    %v632 = vpack.c.b16 %v574, %v573
    %v633 = vpack.c.b16 %v576, %v575
    %v634 = vpack.c.b16 %v578, %v577
    %v635 = vpack.c.b16 %v580, %v579
    %v636 = vpack.c.b16 %v582, %v581
    %v637 = vpack.c.b16 %v584, %v583
    %v638 = vpack.c.b16 %v586, %v585
    %v639 = vpack.c.b16 %v588, %v587
    %v640 = vpack.c.b16 %v590, %v589
    %v641 = vpack.c.b16 %v592, %v591
    %v642 = vpack.c.b16 %v594, %v593
    %v643 = vpack.c.b16 %v596, %v595
    %v644 = vpack.c.b16 %v598, %v597
    %v645 = vpack.c.b16 %v600, %v599
    %v646 = vpack.c.b16 %v602, %v601
    %v647 = vpack.c.b16 %v604, %v603
    %v648 = vpack.c.b16 %v606, %v605
    %v649 = vpack.c.b16 %v608, %v607
    %v650 = vpack.c.b16 %v610, %v609
    %v651 = vpack.c.b16 %v612, %v611
    %v652 = vpack.c.b16 %v614, %v613
    %v653 = vpack.c.b16 %v616, %v615
    %v654 = vpack.c.b16 %v618, %v617
    %v655 = vpack.c.b16 %v620, %v619
    %v656 = vpack.c.b16 %v622, %v621
    %v657 = vpack.c.b16 %v624, %v623
    %v658 = vpack.c.b16 %v626, %v625
    %691 = vmatprep.subr.bf16.mxu0 0
    %692 = vmatpush1.bf16.msra.mxu0 %v634
    %693 = vmatprep.subr.bf16.mxu0 0
    %694 = vmatpush1.bf16.msra.mxu0 %v633
    %695 = vmatprep.subr.bf16.mxu0 0
    %696 = vmatpush1.bf16.msra.mxu0 %v632
    %697 = vmatprep.subr.bf16.mxu0 0
    %698 = vmatpush1.bf16.msra.mxu0 %v631
    %699 = vmatprep.subr.bf16.mxu0 0
    %700 = vmatpush1.bf16.msra.mxu0 %v630
    %701 = vmatprep.subr.bf16.mxu0 0
    %702 = vmatpush1.bf16.msra.mxu0 %v629
    %703 = vmatprep.subr.bf16.mxu0 0
    %704 = vmatpush1.bf16.msra.mxu0 %v628
    %705 = vmatprep.subr.bf16.mxu0 0
    %706 = vmatpush1.bf16.msra.mxu0 %v627
    %707 = vmatprep.subr.bf16.mxu0 0
    %708 = vmatpush2.bf16.msra.mxu0 %v642
    %709 = vmatprep.subr.bf16.mxu0 0
    %710 = vmatpush2.bf16.msra.mxu0 %v641
    %711 = vmatprep.subr.bf16.mxu0 0
    %712 = vmatpush2.bf16.msra.mxu0 %v640
    %713 = vmatprep.subr.bf16.mxu0 0
    %714 = vmatpush2.bf16.msra.mxu0 %v639
    %715 = vmatprep.subr.bf16.mxu0 0
    %716 = vmatpush2.bf16.msra.mxu0 %v638
    %717 = vmatprep.subr.bf16.mxu0 0
    %718 = vmatpush2.bf16.msra.mxu0 %v637
    %719 = vmatprep.subr.bf16.mxu0 0
    %720 = vmatpush2.bf16.msra.mxu0 %v636
    %721 = vmatprep.subr.bf16.mxu0 0
    %722 = vmatpush2.bf16.msra.mxu0 %v635
    %723 = vmatprep.mubr.bf16.mxu0 %v425
    %724 = vmatmul.mubr.bf16.gmra.mxu0 %v424
    %v725 = vpop.f32.mrf.mxu0
    %v726 = vadd.f32 %v497, %v725
    %v727 = vpop.f32.mrf.mxu0
    %v728 = vpop.f32.mrf.mxu0
    %v729 = vadd.f32 %v497, %v728
    %v730 = vpop.f32.mrf.mxu0
    %731 = vdwg.mxu0
    %732 = vmatprep.subr.bf16.mxu0 0
    %733 = vmatpush1.bf16.msra.mxu0 %v650
    %734 = vmatprep.subr.bf16.mxu0 0
    %735 = vmatpush1.bf16.msra.mxu0 %v649
    %736 = vmatprep.subr.bf16.mxu0 0
    %737 = vmatpush1.bf16.msra.mxu0 %v648
    %738 = vmatprep.subr.bf16.mxu0 0
    %739 = vmatpush1.bf16.msra.mxu0 %v647
    %740 = vmatprep.subr.bf16.mxu0 0
    %741 = vmatpush1.bf16.msra.mxu0 %v646
    %742 = vmatprep.subr.bf16.mxu0 0
    %743 = vmatpush1.bf16.msra.mxu0 %v645
    %744 = vmatprep.subr.bf16.mxu0 0
    %745 = vmatpush1.bf16.msra.mxu0 %v644
    %746 = vmatprep.subr.bf16.mxu0 0
    %747 = vmatpush1.bf16.msra.mxu0 %v643
    %748 = vmatprep.subr.bf16.mxu0 0
    %749 = vmatpush2.bf16.msra.mxu0 %v658
    %750 = vmatprep.subr.bf16.mxu0 0
    %751 = vmatpush2.bf16.msra.mxu0 %v657
    %752 = vmatprep.subr.bf16.mxu0 0
    %753 = vmatpush2.bf16.msra.mxu0 %v656
    %754 = vmatprep.subr.bf16.mxu0 0
    %755 = vmatpush2.bf16.msra.mxu0 %v655
    %756 = vmatprep.subr.bf16.mxu0 0
    %757 = vmatpush2.bf16.msra.mxu0 %v654
    %758 = vmatprep.subr.bf16.mxu0 0
    %759 = vmatpush2.bf16.msra.mxu0 %v653
    %760 = vmatprep.subr.bf16.mxu0 0
    %761 = vmatpush2.bf16.msra.mxu0 %v652
    %762 = vmatprep.subr.bf16.mxu0 0
    %763 = vmatpush2.bf16.msra.mxu0 %v651
    %764 = vmatprep.mubr.bf16.mxu0 %v427
    %765 = vmatmul.mubr.bf16.gmra.mxu0 %v426
    %v766 = vpop.f32.mrf.mxu0
    %v767 = vadd.f32 %v726, %v766
    %v768 = vpop.f32.mrf.mxu0
    %v769 = vpop.f32.mrf.mxu0
    %v770 = vadd.f32 %v729, %v769
    %v771 = vpop.f32.mrf.mxu0
    %772 = vdwg.mxu0
    %v773 = vadd.f32 %v767, %v81
    %v774 = vadd.f32 %v770, %v82
    %775 = vadd.xlane.f32.xlu0 %v773
    %v776 = vpop.xlane.xlu0 %775
    %777 = vadd.xlane.f32.xlu0 %v774
    %v778 = vpop.xlane.xlu0 %777
    %v779 = vrcp.pop 128.0
    %v780 = vmul.f32 %v776, %v779
    %v781 = vmul.f32 %v778, %v779
    %v782 = vmul.f32 %v773, %v773
    %v783 = vmul.f32 %v774, %v774
    %784 = vadd.xlane.f32.xlu0 %v782
    %v785 = vpop.xlane.xlu0 %784
    %786 = vadd.xlane.f32.xlu0 %v783
    %v787 = vpop.xlane.xlu0 %786
    %v788 = vmul.f32 %v785, %v779
    %v789 = vmul.f32 %v787, %v779
    %v790 = vmul.f32 %v780, %v780
    %v791 = vmul.f32 %v781, %v781
    %v792 = vsub.f32 %v788, %v790
    %v793 = vsub.f32 %v789, %v791
    %v794 = vmax.f32 %v792, 0.0
    %v795 = vmax.f32 %v793, 0.0
    %v796 = vsub.f32 %v773, %v780
    %v797 = vsub.f32 %v774, %v781
    %v798 = vadd.f32 %v794, 1e-12
    %v799 = vadd.f32 %v795, 1e-12
    %v800 = vrsqrt.pop %v798
    %v801 = vrsqrt.pop %v799
    %v802 = vmul.f32 %v796, %v800
    %v803 = vmul.f32 %v797, %v801
    %v804 = vld [vmem:[%s5] sm:$0x1]
    %v806 = vlaneseq
    %v807 = vshrl.u32 %v806, 7
    %v808 = vsub.s32 0, %v807
    %v809 = vrot.slane %v804, %v808
    %v811 = vmul.f32 %v802, %v809
    %v812 = vmul.f32 %v803, %v809
    %v813 = vld [vmem:[%s6] sm:$0x1]
    %v815 = vlaneseq
    %v816 = vshrl.u32 %v815, 7
    %v817 = vsub.s32 0, %v816
    %v818 = vrot.slane %v813, %v817
    %v820 = vadd.f32 %v811, %v818
    %v821 = vadd.f32 %v812, %v818
    %822 = vst [vmem:[#allocation10] sm:$0xff] %v820
    %823 = vst [vmem:[#allocation10 + $0x8] sm:$0xff] %v821
    // Predicated region
    $region46: #{tpu_custom_call.1} parent=1 // pred_check
      _
    $region47: #{tpu_custom_call.1} parent=1 // pred_check_branch
      %825 = sbr.rel (0) target = $region49
    $region48: #{tpu_custom_call.1} parent=1 // pred_region
      %s827 = ssub.s32 256, 256
      %828 = vsyncadd [#allocation4], %s827
      %s829 = sshll.u32 [#allocation10], 4
      %s830 = int_to_ptr.vmem [resolvable:$true] %s829
      %835 = dma.vmem_to_hbm [thread:$0]  %s830, 256, %s7, [#allocation4], 128, 128, 8
    $region49: #{tpu_custom_call.1} parent=1 // pred_fallthru
      _
    // Predicated region
    $region50: #{tpu_custom_call.1} parent=1 // pred_check
      _
    $region51: #{tpu_custom_call.1} parent=1 // pred_check_branch
      %837 = sbr.rel (0) target = $region53
    $region52: #{tpu_custom_call.1} parent=1 // pred_region
      %838 = dma.done [#allocation4], 256
    $region53: #{tpu_custom_call.1} parent=1 // pred_fallthru
      _
    %839 = vsyncpa [#allocation3], 1
    %840 = vsyncpa [#allocation6], 1
    %841 = vsyncpa [#allocation9], 1
    %842 = vsyncpa [#allocation4], 1

</llo_original>
